<compile_context>
chip_gen: v5e
topology: v5e:2x2
jax: 0.10.0
libtpu: 0.0.40
codegen_flags: <defaults>
</compile_context>

<pallas_src>
import functools

import jax
import jax.numpy as jnp
from jax import lax
from jax.experimental import pallas as pl
from jax.experimental.pallas import tpu as pltpu

LANES = 128
SUBLANES = 8
EPS = 1e-06
_MIN_ROWS_PER_SHARD = 512  # don't split across cores unless each gets real work


def _round_up(v, m):
    return ((v + m - 1) // m) * m


def _default_geometry():
    """(tile_rows, shards) defaults per TPU generation (per perf review)."""
    kind = ""
    try:
        kind = jax.devices()[0].device_kind.lower()
    except Exception:
        pass
    if "v7" in kind:
        return 8192, 2   # 2 TCs/chip; 4 MiB/block * 2 inputs * 2 bufs = 16 MiB < 32 MiB scoped
    if "v6" in kind:
        return 8192, 1   # single TC; 16 MiB < 32 MiB scoped VMEM
    return 4096, 1       # v5e / unknown: 8 MiB < 16 MiB default scoped VMEM


def _charbonnier_partial_kernel(x_ref, y_ref, o_ref, *, tr, blocks_per_shard,
                                rows, needs_mask, unroll):
    p = pl.program_id(0)   # shard axis ("parallel")
    i = pl.program_id(1)   # reduction axis ("arbitrary", trailing)

    @pl.when(i == 0)
    def _():
        o_ref[...] = jnp.zeros_like(o_ref)

    n_chunks = tr // SUBLANES
    base_row = (p * blocks_per_shard + i) * tr

    if needs_mask:
        # Hoisted out of the loop (JAX does not CSE broadcast_in_dim).
        row0 = base_row + lax.broadcasted_iota(jnp.int32, (SUBLANES, LANES), 0)

    def body(c, acc):
        r0 = pl.multiple_of(c * SUBLANES, SUBLANES)
        x = x_ref[pl.ds(r0, SUBLANES), :].astype(jnp.float32)
        y = y_ref[pl.ds(r0, SUBLANES), :].astype(jnp.float32)
        diff = x - y
        err = jnp.sqrt(diff * diff + jnp.float32(EPS))
        if needs_mask:
            # Rows past the end of the (rows, 128) array are DMA garbage -> zero them.
            err = jnp.where(row0 + c * SUBLANES < rows, err, 0.0)
        return acc + err

    acc = lax.fori_loop(0, n_chunks, body,
                        jnp.zeros((SUBLANES, LANES), jnp.float32),
                        unroll=unroll)
    o_ref[...] += acc[None, :, :]


def l1_charbonnier_loss(x, y, *, tile_rows=None, shards=None):
    """Pallas TPU implementation of L1 Charbonnier loss (mean over all elements)."""
    assert x.shape == y.shape, "X and Y must have the same shape"
    n = x.size
    if n == 0:
        return jnp.float32(0.0)

    xf = x.reshape(-1)
    yf = y.reshape(-1)

    # Lane-aligned main slab (kernel) + tiny ragged tail (<128 elems, plain JAX).
    rows = n // LANES
    if rows < SUBLANES:   # tiny tensor: not worth a kernel launch
        rows = 0
    main_n = rows * LANES
    tail_n = n - main_n

    tail_sum = jnp.float32(0.0)
    if tail_n:
        xt = xf[main_n:].astype(jnp.float32)
        yt = yf[main_n:].astype(jnp.float32)
        dt = xt - yt
        tail_sum = jnp.sum(jnp.sqrt(dt * dt + jnp.float32(EPS)), dtype=jnp.float32)

    if rows == 0:
        return (tail_sum / jnp.float32(n)).astype(jnp.float32)

    xm = (xf if tail_n == 0 else xf[:main_n]).reshape(rows, LANES)
    ym = (yf if tail_n == 0 else yf[:main_n]).reshape(rows, LANES)

    # ---- tile geometry -------------------------------------------------------
    auto_tr, auto_shards = _default_geometry()
    if tile_rows is None:
        itemsize = max(jnp.dtype(x.dtype).itemsize, jnp.dtype(y.dtype).itemsize)
        tile_rows = auto_tr * max(1, 4 // itemsize)   # bf16: 2x rows in same VMEM budget
    tile_rows = max(16, _round_up(int(tile_rows), 16))
    if shards is None:
        shards = auto_shards
    shards = max(1, min(int(shards), rows // _MIN_ROWS_PER_SHARD))

    blocks_per_shard = pl.cdiv(rows, tile_rows * shards)
    total_blocks = blocks_per_shard * shards
    # Shrink the tile (multiple of 16 for bf16 packing) so grid coverage only
    # overshoots `rows` by <16 rows per block -> bounded masked/DMA waste.
    tr = min(tile_rows, _round_up(pl.cdiv(rows, total_blocks), 16))
    needs_mask = (total_blocks * tr) != rows

    kernel = functools.partial(
        _charbonnier_partial_kernel,
        tr=tr, blocks_per_shard=blocks_per_shard, rows=rows,
        needs_mask=needs_mask, unroll=min(8, tr // SUBLANES),
    )

    in_map = lambda p, i: (p * blocks_per_shard + i, 0)

    partials = pl.pallas_call(
        kernel,
        out_shape=jax.ShapeDtypeStruct((shards, SUBLANES, LANES), jnp.float32),
        grid_spec=pltpu.PrefetchScalarGridSpec(
            num_scalar_prefetch=0,
            grid=(shards, blocks_per_shard),
            in_specs=[
                pl.BlockSpec((tr, LANES), in_map),
                pl.BlockSpec((tr, LANES), in_map),
            ],
            out_specs=pl.BlockSpec((1, SUBLANES, LANES), lambda p, i: (p, 0, 0)),
        ),
        compiler_params=pltpu.CompilerParams(
            dimension_semantics=("parallel", "arbitrary"),
        ),
    )(xm, ym)

    total = jnp.sum(partials, dtype=jnp.float32) + tail_sum
    return (total / jnp.float32(n)).astype(jnp.float32)


def _ref_loss(x, y):
    return jnp.mean(jnp.sqrt((x.astype(jnp.float32) - y.astype(jnp.float32)) ** 2
                             + jnp.float32(EPS)))


if __name__ == "__main__":
    key = jax.random.PRNGKey(0)
    kx, ky, ka, kb, kc, kd = jax.random.split(key, 6)

    # (1) Aligned NCHW pansharpening-style batch: n % 128 == 0 -> no pad, no mask.
    X = jax.random.normal(kx, (2, 4, 16, 16), dtype=jnp.float32)
    Y = jax.random.normal(ky, (2, 4, 16, 16), dtype=jnp.float32)
    loss = jax.block_until_ready(l1_charbonnier_loss(X, Y))
    ref = _ref_loss(X, Y)
    assert jnp.allclose(loss, ref, rtol=1e-5, atol=1e-6), (loss, ref)

    # (2) Unaligned shape: exercises in-kernel row masking + plain-JAX ragged tail
    #     (no jnp.pad full-tensor copies anywhere).
    A = jax.random.normal(ka, (1, 3, 33, 33), dtype=jnp.float32)
    B = jax.random.normal(kb, (1, 3, 33, 33), dtype=jnp.float32)
    loss2 = jax.block_until_ready(l1_charbonnier_loss(A, B))
    ref2 = _ref_loss(A, B)
    assert jnp.allclose(loss2, ref2, rtol=1e-5, atol=1e-6), (loss2, ref2)

    # (3) Forced small tile + 2 shards: exercises the multi-block accumulator
    #     (pl.when init + "arbitrary" reduction axis) and the "parallel" shard axis.
    C = jax.random.normal(kc, (4, 8, 64, 64), dtype=jnp.float32)
    D = jax.random.normal(kd, (4, 8, 64, 64), dtype=jnp.float32)
    loss3 = jax.block_until_ready(l1_charbonnier_loss(C, D, tile_rows=64, shards=2))
    ref3 = _ref_loss(C, D)
    assert jnp.allclose(loss3, ref3, rtol=1e-5, atol=1e-6), (loss3, ref3)

    print("KERNEL_OK")
</pallas_src>

<mosaic_0001>
module attributes {stable_mosaic.version = 11 : i64} {
  func.func @_charbonnier_partial_kernel(%arg0: i32, %arg1: i32, %arg2: memref<16x128xf32, #tpu.memory_space<vmem>>, %arg3: memref<16x128xf32, #tpu.memory_space<vmem>>, %arg4: memref<1x8x128xf32, #tpu.memory_space<vmem>>) attributes {dimension_semantics = [#tpu.dimension_semantics<parallel>, #tpu.dimension_semantics<arbitrary>], iteration_bounds = array<i64: 1, 1>, scalar_prefetch = 0 : i64, scratch_operands = 0 : i64, tpu.core_type = #tpu.core_type<tc>, window_params = [{transform_indices = @transform_0, window_bounds = array<i64: 16, 128>}, {transform_indices = @transform_1, window_bounds = array<i64: 16, 128>}, {transform_indices = @transform_2, window_bounds = array<i64: 1, 8, 128>}]} {
    %c0_i32 = arith.constant 0 : i32
    %0 = arith.cmpi eq, %arg1, %c0_i32 : i32
    %1 = arith.extui %0 : i1 to i32
    %c0_i32_0 = arith.constant 0 : i32
    %2 = arith.cmpi ne, %1, %c0_i32_0 : i32
    scf.if %2 {
      %cst_14 = arith.constant 0.000000e+00 : f32
      %32 = vector.broadcast %cst_14 : f32 to vector<1x8x128xf32>
      %c0_15 = arith.constant 0 : index
      %c0_16 = arith.constant 0 : index
      %c0_17 = arith.constant 0 : index
      %33 = vector.load %arg4[%c0_15, %c0_16, %c0_17] : memref<1x8x128xf32, #tpu.memory_space<vmem>>, vector<1x8x128xf32>
      tpu.vector_store %arg4[%c0_15, %c0_16, %c0_17], %32 {strides = array<i32>} : memref<1x8x128xf32, #tpu.memory_space<vmem>>, vector<1x8x128xf32>,
    } else {
    }
    %cst = arith.constant 0.000000e+00 : f32
    %3 = vector.broadcast %cst : f32 to vector<8x128xf32>
    %c0_i32_1 = arith.constant 0 : i32
    %c8_i32 = arith.constant 8 : i32
    %4 = arith.muli %c0_i32_1, %c8_i32 : i32
    %5 = tpu.assume_multiple %4, 8 : i32
    %6 = arith.index_cast %5 : i32 to index
    %c0 = arith.constant 0 : index
    %7 = vector.load %arg2[%6, %c0] : memref<16x128xf32, #tpu.memory_space<vmem>>, vector<8x128xf32>
    %8 = arith.index_cast %5 : i32 to index
    %c0_2 = arith.constant 0 : index
    %9 = vector.load %arg3[%8, %c0_2] : memref<16x128xf32, #tpu.memory_space<vmem>>, vector<8x128xf32>
    %10 = arith.subf %7, %9 : vector<8x128xf32>
    %11 = arith.mulf %10, %10 : vector<8x128xf32>
    %cst_3 = arith.constant 9.99999997E-7 : f32
    %12 = vector.broadcast %cst_3 : f32 to vector<8x128xf32>
    %13 = arith.addf %11, %12 : vector<8x128xf32>
    %14 = math.sqrt %13 : vector<8x128xf32>
    %15 = arith.addf %3, %14 : vector<8x128xf32>
    %c1_i32 = arith.constant 1 : i32
    %c8_i32_4 = arith.constant 8 : i32
    %16 = arith.muli %c1_i32, %c8_i32_4 : i32
    %17 = tpu.assume_multiple %16, 8 : i32
    %18 = arith.index_cast %17 : i32 to index
    %c0_5 = arith.constant 0 : index
    %19 = vector.load %arg2[%18, %c0_5] : memref<16x128xf32, #tpu.memory_space<vmem>>, vector<8x128xf32>
    %20 = arith.index_cast %17 : i32 to index
    %c0_6 = arith.constant 0 : index
    %21 = vector.load %arg3[%20, %c0_6] : memref<16x128xf32, #tpu.memory_space<vmem>>, vector<8x128xf32>
    %22 = arith.subf %19, %21 : vector<8x128xf32>
    %23 = arith.mulf %22, %22 : vector<8x128xf32>
    %cst_7 = arith.constant 9.99999997E-7 : f32
    %24 = vector.broadcast %cst_7 : f32 to vector<8x128xf32>
    %25 = arith.addf %23, %24 : vector<8x128xf32>
    %26 = math.sqrt %25 : vector<8x128xf32>
    %27 = arith.addf %15, %26 : vector<8x128xf32>
    %c2_i32 = arith.constant 2 : i32
    %c0_8 = arith.constant 0 : index
    %c0_9 = arith.constant 0 : index
    %c0_10 = arith.constant 0 : index
    %28 = vector.load %arg4[%c0_8, %c0_9, %c0_10] : memref<1x8x128xf32, #tpu.memory_space<vmem>>, vector<1x8x128xf32>
    %29 = vector.shape_cast %27 : vector<8x128xf32> to vector<1x8x128xf32>
    %30 = arith.addf %28, %29 : vector<1x8x128xf32>
    %c0_11 = arith.constant 0 : index
    %c0_12 = arith.constant 0 : index
    %c0_13 = arith.constant 0 : index
    %31 = vector.load %arg4[%c0_11, %c0_12, %c0_13] : memref<1x8x128xf32, #tpu.memory_space<vmem>>, vector<1x8x128xf32>
    tpu.vector_store %arg4[%c0_11, %c0_12, %c0_13], %30 {strides = array<i32>} : memref<1x8x128xf32, #tpu.memory_space<vmem>>, vector<1x8x128xf32>,
    return
  }
  func.func @transform_0(%arg0: i32, %arg1: i32) -> (i32, i32) {
    %c1_i32 = arith.constant 1 : i32
    %0 = arith.muli %arg0, %c1_i32 : i32
    %1 = arith.addi %0, %arg1 : i32
    %c0_i32 = arith.constant 0 : i32
    %c0_i32_0 = arith.constant 0 : i32
    return %1, %c0_i32 : i32, i32
  }
  func.func @transform_1(%arg0: i32, %arg1: i32) -> (i32, i32) {
    %c1_i32 = arith.constant 1 : i32
    %0 = arith.muli %arg0, %c1_i32 : i32
    %1 = arith.addi %0, %arg1 : i32
    %c0_i32 = arith.constant 0 : i32
    %c0_i32_0 = arith.constant 0 : i32
    return %1, %c0_i32 : i32, i32
  }
  func.func @transform_2(%arg0: i32, %arg1: i32) -> (i32, i32, i32) {
    %c0_i32 = arith.constant 0 : i32
    %c0_i32_0 = arith.constant 0 : i32
    %c0_i32_1 = arith.constant 0 : i32
    return %arg0, %c0_i32, %c0_i32_0 : i32, i32, i32
  }
}

</mosaic_0001>

<llo_original>
// kernel: tpu_custom_call.1
$region0: #{tpu_custom_call.1}
  #allocation0 [shape = 'u32[]', space=smem, size = 0x4, offset = 0x4, fixed_abs, tag = 'smem constant byte address 0x4 - core index']
  #allocation1 [shape = 'u32[72,128]{1,0:T(1,128)}', space=vmem, size = 0x9000, scoped, tag = 'internal scratch']
  %s0 = inlined_call_operand.hbm [shape: f32[16,128], index: 0, kind: input, shape index: {}]
  %s1 = inlined_call_operand.hbm [shape: f32[16,128], index: 1, kind: input, shape index: {}]
  %s2 = inlined_call_operand.hbm [shape: f32[1,8,128], index: 2, kind: output, shape index: {}]
  %s3 = sld [smem:[#allocation0]]
  $region30: #{tpu_custom_call.1} parent=0
    _
  %s5 = ssub.s32 1, %s3
  %s6 = scalar_select 0, %s5, %s3
  $region1: #{tpu_custom_call.1} parent=0
    #allocation2 [shape = 'u8[8192]{0}', space=vmem, size = 0x2000, scoped, tag = 'input window, operand 0, single buffered']
    #allocation3 [shape = 's32[1]{0}', space=sflag, size = 0x4, scoped, tag = 'scoped memory for tpu_custom_call.1']
    #allocation4 [shape = 's32[1]{0}', space=sflag, size = 0x4, scoped, tag = 'scoped memory for tpu_custom_call.1']
    #allocation5 [shape = 'u8[8192]{0}', space=vmem, size = 0x2000, scoped, tag = 'input window, operand 1, single buffered']
    #allocation6 [shape = 's32[1]{0}', space=sflag, size = 0x4, scoped, tag = 'scoped memory for tpu_custom_call.1']
    #allocation7 [shape = 'u8[4096]{0}', space=vmem, size = 0x1000, scoped, tag = 'output window, operand 0, single buffered']
    %7 = vsyncpa [#allocation3], 0
    %8 = vsyncpa [#allocation6], 0
    %9 = vsyncpa [#allocation4], 0
    // Predicated region
    $region2: #{tpu_custom_call.1} parent=1 // pred_check
      _
    $region3: #{tpu_custom_call.1} parent=1 // pred_check_branch
      %11 = sbr.rel (0) target = $region5
    $region4: #{tpu_custom_call.1} parent=1 // pred_region
      %s12 = sadd.s32 0, 0
      %s13 = smul.u32 2, %s12
      %15 = vsyncadd [#allocation3], 0
      %s16 = smul.addr %s13, 8
      %s17 = scalar_lea.hbm %s0, %s16
      %s18 = sshll.u32 %s17, 4
      %s19 = int_to_ptr.hbm [resolvable:$true] %s18
      %s20 = sshll.u32 [#allocation2], 4
      %s21 = int_to_ptr.vmem [resolvable:$true] %s20
      %26 = dma.hbm_to_vmem [thread:$0]  %s19, 256, %s21, [#allocation3], 128, 128, 8
    $region5: #{tpu_custom_call.1} parent=1 // pred_fallthru
      _
    // Predicated region
    $region6: #{tpu_custom_call.1} parent=1 // pred_check
      _
    $region7: #{tpu_custom_call.1} parent=1 // pred_check_branch
      %28 = sbr.rel (0) target = $region9
    $region8: #{tpu_custom_call.1} parent=1 // pred_region
      %s29 = sadd.s32 0, 0
      %s30 = smul.u32 2, %s29
      %32 = vsyncadd [#allocation6], 0
      %s33 = smul.addr %s30, 8
      %s34 = scalar_lea.hbm %s1, %s33
      %s35 = sshll.u32 %s34, 4
      %s36 = int_to_ptr.hbm [resolvable:$true] %s35
      %s37 = sshll.u32 [#allocation5], 4
      %s38 = int_to_ptr.vmem [resolvable:$true] %s37
      %43 = dma.hbm_to_vmem [thread:$0]  %s36, 256, %s38, [#allocation6], 128, 128, 8
    $region9: #{tpu_custom_call.1} parent=1 // pred_fallthru
      _
    // Predicated region
    $region10: #{tpu_custom_call.1} parent=1 // pred_check
      _
    $region11: #{tpu_custom_call.1} parent=1 // pred_check_branch
      %45 = sbr.rel (0) target = $region13
    $region12: #{tpu_custom_call.1} parent=1 // pred_region
      %47 = dma.done [#allocation3], 256
    $region13: #{tpu_custom_call.1} parent=1 // pred_fallthru
      _
    // Predicated region
    $region14: #{tpu_custom_call.1} parent=1 // pred_check
      _
    $region15: #{tpu_custom_call.1} parent=1 // pred_check_branch
      %49 = sbr.rel (0) target = $region17
    $region16: #{tpu_custom_call.1} parent=1 // pred_region
      %51 = dma.done [#allocation6], 256
    $region17: #{tpu_custom_call.1} parent=1 // pred_fallthru
      _
    %s52 = sadd.s32 0, 0
    %s53 = smul.u32 2, %s52
    %s54 = sadd.s32 0, 0
    %s55 = smul.u32 2, %s54
    %p56 = scmp.eq.s32.totalorder 0, 0
    // Predicated region
    $region18: #{tpu_custom_call.1} parent=1 // pred_check
      %p57 = pneg %p56
    $region19: #{tpu_custom_call.1} parent=1 // pred_check_branch
      %59 = sbr.rel (%p57) target = $region21
    $region20: #{tpu_custom_call.1} parent=1 // pred_region
      %60 = vst [vmem:[#allocation7] sm:$0xff] 0.0
    $region21: #{tpu_custom_call.1} parent=1 // pred_fallthru
      _
    %v61 = vld [vmem:[#allocation2] sm:$0xff]
    %v62 = vld [vmem:[#allocation5] sm:$0xff]
    %v63 = vsub.f32 %v61, %v62
    %v64 = vmul.f32 %v63, %v63
    %v65 = vadd.f32 %v64, 1e-06
    %v66 = vrsqrt.pop %v65
    %v67 = vmul.f32 %v66, %v65
    %v68 = vmul.f32 %v67, %v66
    %v69 = vmul.f32 0.5, %v68
    %v70 = vsub.f32 1.5, %v69
    %v71 = vmul.f32 %v66, %v70
    %v72 = vmul.f32 %v65, %v71
    %vm73 = vcmp.eq.f32.partialorder %v65, inf
    %v74 = vsel %vm73, %v65, %v72
    %vm75 = vcmp.eq.f32.partialorder %v65, 0.0
    %v76 = vand.u32 %v65, 2147483648
    %v77 = vsel %vm75, %v76, %v74
    %v78 = vadd.f32 %v77, 0.0
    %s79 = scalar_lea.vmem [#allocation2], 8
    %v80 = vld [vmem:[%s79] sm:$0xff]
    %s81 = scalar_lea.vmem [#allocation5], 8
    %v82 = vld [vmem:[%s81] sm:$0xff]
    %v83 = vsub.f32 %v80, %v82
    %v84 = vmul.f32 %v83, %v83
    %v85 = vadd.f32 %v84, 1e-06
    %v86 = vrsqrt.pop %v85
    %v87 = vmul.f32 %v86, %v85
    %v88 = vmul.f32 %v87, %v86
    %v89 = vmul.f32 0.5, %v88
    %v90 = vsub.f32 1.5, %v89
    %v91 = vmul.f32 %v86, %v90
    %v92 = vmul.f32 %v85, %v91
    %vm93 = vcmp.eq.f32.partialorder %v85, inf
    %v94 = vsel %vm93, %v85, %v92
    %vm95 = vcmp.eq.f32.partialorder %v85, 0.0
    %v96 = vand.u32 %v85, 2147483648
    %v97 = vsel %vm95, %v96, %v94
    %v98 = vadd.f32 %v78, %v97
    %v99 = vld [vmem:[#allocation7] sm:$0xff]
    %v100 = vadd.f32 %v99, %v98
    %101 = vst [vmem:[#allocation7] sm:$0xff] %v100
    // Predicated region
    $region22: #{tpu_custom_call.1} parent=1 // pred_check
      _
    $region23: #{tpu_custom_call.1} parent=1 // pred_check_branch
      %103 = sbr.rel (0) target = $region25
    $region24: #{tpu_custom_call.1} parent=1 // pred_region
      %105 = vsyncadd [#allocation4], 0
      %s107 = sshll.u32 [#allocation7], 4
      %s108 = int_to_ptr.vmem [resolvable:$true] %s107
      %s109 = sshll.u32 %s2, 4
      %s110 = int_to_ptr.hbm [resolvable:$true] %s109
      %112 = dma.vmem_to_hbm [thread:$0]  %s108, 128, %s110, [#allocation4]
    $region25: #{tpu_custom_call.1} parent=1 // pred_fallthru
      _
    // Predicated region
    $region26: #{tpu_custom_call.1} parent=1 // pred_check
      _
    $region27: #{tpu_custom_call.1} parent=1 // pred_check_branch
      %114 = sbr.rel (0) target = $region29
    $region28: #{tpu_custom_call.1} parent=1 // pred_region
      %116 = dma.done [#allocation4], 128
    $region29: #{tpu_custom_call.1} parent=1 // pred_fallthru
      _
    %117 = vsyncpa [#allocation3], 1
    %118 = vsyncpa [#allocation6], 1
    %119 = vsyncpa [#allocation4], 1

</llo_original>
